<compile_context>
chip_gen: v7x
topology: tpu7x:2x2x1
jax: 0.10.0
libtpu: 0.0.40
codegen_flags: <defaults>
</compile_context>

<pallas_src>
import jax
import jax.numpy as jnp
from jax.experimental import pallas as pl
from jax.experimental.pallas import tpu as pltpu

_LANES = 128            # vreg lane width (batch maps here)
_SUBLANES = 8           # f32 sublane tiling
_MAX_BLOCK_ROWS = 4096  # (4096,128) f32 = 2 MiB/operand-slab; v5e-safe w/ dbl-buffer


def _round_up(x, m):
    return ((x + m - 1) // m) * m


def expert_kernel(wb_ref, x_ref, o_ref):
    # wb_ref: (3,) f32 in SMEM -> [w0, w1, b]
    # x_ref:  (2, block_rows, 128) f32 in VMEM  (x[:,0] slab, x[:,1] slab)
    # o_ref:  (block_rows, 128) f32 in VMEM, batch on the lane axis.
    w0 = wb_ref[0]
    w1 = wb_ref[1]
    b = wb_ref[2]
    # Pure VPU: two scalar-broadcast multiply-adds, no MXU, lane-dense stores.
    o_ref[...] = x_ref[0] * w0 + x_ref[1] * w1 + b


def expert_forward(x, weight, bias):
    """Linear(2,1): x (N,2), weight (1,2) (PyTorch layout), bias (1,) -> (N,1) f32."""
    n = x.shape[0]
    if n == 0:  # empty-batch guard (avoids zero-sized grid / div-by-zero)
        return jnp.zeros((0, 1), jnp.float32)

    x = x.astype(jnp.float32)
    wb = jnp.concatenate([weight.reshape(-1), bias.reshape(-1)]).astype(jnp.float32)  # (3,)

    # --- block / grid selection -------------------------------------------
    rows = pl.cdiv(n, _LANES)                       # lane-dense rows of 128 elems
    rows_aligned = _round_up(rows, _SUBLANES)
    # At least 2 blocks when there is enough work so both v7x TCs get a share;
    # otherwise one block.  Divide evenly to minimize last-block padding.
    min_blocks = 2 if rows_aligned >= 2 * _SUBLANES else 1
    num_blocks = max(min_blocks, pl.cdiv(rows_aligned, _MAX_BLOCK_ROWS))
    block_rows = _round_up(pl.cdiv(rows_aligned, num_blocks), _SUBLANES)
    rows_pad = num_blocks * block_rows
    n_pad = rows_pad * _LANES
    pad = n_pad - n

    # --- layout plumbing: batch onto the lane axis, both columns stacked ---
    # (N,2) -> (2,N) -> pad -> (2, rows_pad, 128).  With allow_input_fusion,
    # XLA may fuse this directly into the pallas_call operand.
    x_stacked = jnp.pad(x.T, ((0, 0), (0, pad))).reshape(2, rows_pad, _LANES)

    out = pl.pallas_call(
        expert_kernel,
        out_shape=jax.ShapeDtypeStruct((rows_pad, _LANES), jnp.float32),
        grid=(num_blocks,),
        in_specs=[
            pl.BlockSpec(memory_space=pltpu.MemorySpace.SMEM),            # [w0, w1, b]
            pl.BlockSpec((2, block_rows, _LANES), lambda i: (0, i, 0)),   # stacked x
        ],
        out_specs=pl.BlockSpec((block_rows, _LANES), lambda i: (i, 0)),
        compiler_params=pltpu.CompilerParams(
            dimension_semantics=("parallel",),
            allow_input_fusion=[False, True],
        ),
    )(wb, x_stacked)

    # Undo the lane-dense layout: (rows_pad, 128) -> (N, 1).
    # Slice only when padding exists (padded tail holds just the bias value).
    flat = out.reshape(-1)
    if n_pad != n:
        flat = flat[:n]
    return flat.reshape(n, 1)


if __name__ == "__main__":
    key = jax.random.PRNGKey(0)
    kx, kw, kb = jax.random.split(key, 3)

    # Deterministic parameter init mimicking nn.Linear(2, 1):
    # uniform(-1/sqrt(in_features), 1/sqrt(in_features))
    bound = 1.0 / (2.0 ** 0.5)
    weight = jax.random.uniform(kw, (1, 2), jnp.float32, -bound, bound)
    bias = jax.random.uniform(kb, (1,), jnp.float32, -bound, bound)

    # Small example: batch=8, in_features=2 (single-block path).
    x = jax.random.normal(kx, (8, 2), jnp.float32)
    out = jax.block_until_ready(expert_forward(x, weight, bias))
    ref = x @ weight.T + bias
    assert out.shape == (8, 1)
    assert jnp.allclose(out, ref, atol=1e-5, rtol=1e-5), "mismatch vs reference"

    # Non-lane-aligned N (padding path).
    x2 = jax.random.normal(kx, (300, 2), jnp.float32)
    out2 = jax.block_until_ready(expert_forward(x2, weight, bias))
    ref2 = x2 @ weight.T + bias
    assert out2.shape == (300, 1)
    assert jnp.allclose(out2, ref2, atol=1e-5, rtol=1e-5), "mismatch (padded)"

    # Mid-size N -> exercises the >=2-block (dual TensorCore) path.
    x3 = jax.random.normal(kx, (2050, 2), jnp.float32)
    out3 = jax.block_until_ready(expert_forward(x3, weight, bias))
    ref3 = x3 @ weight.T + bias
    assert out3.shape == (2050, 1)
    assert jnp.allclose(out3, ref3, atol=1e-5, rtol=1e-5), "mismatch (multi-block)"

    print("KERNEL_OK")
</pallas_src>

<mosaic_0001>
module attributes {stable_mosaic.version = 11 : i64} {
  func.func @expert_kernel(%arg0: i32, %arg1: memref<3xf32, #tpu.memory_space<smem>>, %arg2: memref<2x8x128xf32, #tpu.memory_space<vmem>>, %arg3: memref<8x128xf32, #tpu.memory_space<vmem>>) attributes {dimension_semantics = [#tpu.dimension_semantics<parallel>], iteration_bounds = array<i64: 1>, scalar_prefetch = 0 : i64, scratch_operands = 0 : i64, tpu.core_type = #tpu.core_type<tc>, window_params = [{transform_indices = @transform_0, window_bounds = array<i64: 3>}, {transform_indices = @transform_1, window_bounds = array<i64: 2, 8, 128>}, {transform_indices = @transform_2, window_bounds = array<i64: 8, 128>}]} {
    %c0 = arith.constant 0 : index
    %0 = memref.load %arg1[%c0] : memref<3xf32, #tpu.memory_space<smem>>
    %c1 = arith.constant 1 : index
    %1 = memref.load %arg1[%c1] : memref<3xf32, #tpu.memory_space<smem>>
    %c2 = arith.constant 2 : index
    %2 = memref.load %arg1[%c2] : memref<3xf32, #tpu.memory_space<smem>>
    %c0_0 = arith.constant 0 : index
    %c0_1 = arith.constant 0 : index
    %c0_2 = arith.constant 0 : index
    %3 = vector.load %arg2[%c0_0, %c0_1, %c0_2] : memref<2x8x128xf32, #tpu.memory_space<vmem>>, vector<1x8x128xf32>
    %4 = vector.shape_cast %3 : vector<1x8x128xf32> to vector<8x128xf32>
    %5 = vector.broadcast %0 : f32 to vector<8x128xf32>
    %6 = arith.mulf %4, %5 : vector<8x128xf32>
    %c1_3 = arith.constant 1 : index
    %c0_4 = arith.constant 0 : index
    %c0_5 = arith.constant 0 : index
    %7 = vector.load %arg2[%c1_3, %c0_4, %c0_5] : memref<2x8x128xf32, #tpu.memory_space<vmem>>, vector<1x8x128xf32>
    %8 = vector.shape_cast %7 : vector<1x8x128xf32> to vector<8x128xf32>
    %9 = vector.broadcast %1 : f32 to vector<8x128xf32>
    %10 = arith.mulf %8, %9 : vector<8x128xf32>
    %11 = arith.addf %6, %10 : vector<8x128xf32>
    %12 = vector.broadcast %2 : f32 to vector<8x128xf32>
    %13 = arith.addf %11, %12 : vector<8x128xf32>
    %c0_6 = arith.constant 0 : index
    %c0_7 = arith.constant 0 : index
    %14 = vector.load %arg3[%c0_6, %c0_7] : memref<8x128xf32, #tpu.memory_space<vmem>>, vector<8x128xf32>
    tpu.vector_store %arg3[%c0_6, %c0_7], %13 {strides = array<i32>} : memref<8x128xf32, #tpu.memory_space<vmem>>, vector<8x128xf32>,
    return
  }
  func.func @transform_0(%arg0: i32) -> i32 {
    %c0_i32 = arith.constant 0 : i32
    %c0_i32_0 = arith.constant 0 : i32
    return %c0_i32 : i32
  }
  func.func @transform_1(%arg0: i32) -> (i32, i32, i32) {
    %c0_i32 = arith.constant 0 : i32
    %c0_i32_0 = arith.constant 0 : i32
    %c0_i32_1 = arith.constant 0 : i32
    return %c0_i32, %arg0, %c0_i32_0 : i32, i32, i32
  }
  func.func @transform_2(%arg0: i32) -> (i32, i32) {
    %c0_i32 = arith.constant 0 : i32
    %c0_i32_0 = arith.constant 0 : i32
    return %arg0, %c0_i32 : i32, i32
  }
}

</mosaic_0001>

<llo_original>
// kernel: tpu_custom_call.1
$region0: #{tpu_custom_call.1}
  #allocation0 [shape = 'u32[]', space=smem, size = 0x4, offset = 0x4, fixed_abs, tag = 'smem constant byte address 0x4 - core index']
  #allocation1 [shape = 'u32[144,128]{1,0:T(1,128)}', space=vmem, size = 0x12000, scoped, tag = 'internal scratch']
  %s0 = inlined_call_operand.hbm [shape: f32[3], index: 0, kind: input, shape index: {}]
  %s1 = inlined_call_operand.hbm [shape: f32[2,8,128], index: 1, kind: input, shape index: {}]
  %s2 = inlined_call_operand.hbm [shape: f32[8,128], index: 2, kind: output, shape index: {}]
  %s3 = sld [smem:[#allocation0]]
  $region26: #{tpu_custom_call.1} parent=0
    _
  %s5 = ssub.s32 1, %s3
  %s6 = scalar_select 0, %s5, %s3
  $region1: #{tpu_custom_call.1} parent=0
    #allocation2 [shape = 'u8[512]{0}', space=smem, size = 0x200, scoped, tag = 'input window, operand 0, single buffered']
    #allocation3 [shape = 's32[1]{0}', space=sflag, size = 0x4, scoped, tag = 'scoped memory for tpu_custom_call.1']
    #allocation4 [shape = 's32[1]{0}', space=sflag, size = 0x4, scoped, tag = 'scoped memory for tpu_custom_call.1']
    #allocation5 [shape = 's32[1]{0}', space=sflag, size = 0x4, scoped, tag = 'scoped memory for tpu_custom_call.1']
    #allocation6 [shape = 'u8[8192]{0}', space=vmem, size = 0x2000, scoped, tag = 'input window, operand 1, single buffered']
    #allocation7 [shape = 'u8[4096]{0}', space=vmem, size = 0x1000, scoped, tag = 'output window, operand 0, single buffered']
    %7 = vsyncpa [#allocation5], 0
    %8 = vsyncpa [#allocation3], 0
    %9 = vsyncpa [#allocation4], 0
    // Predicated region
    $region2: #{tpu_custom_call.1} parent=1 // pred_check
      _
    $region3: #{tpu_custom_call.1} parent=1 // pred_check_branch
      %11 = sbr.rel (0) target = $region5
    $region4: #{tpu_custom_call.1} parent=1 // pred_region
      %s13 = ssub.s32 16, 16
      %14 = vsyncadd [#allocation5], %s13
      %17 = dma.hbm_to_smem %s0, 16, [#allocation2], [#allocation5]
    $region5: #{tpu_custom_call.1} parent=1 // pred_fallthru
      _
    // Predicated region
    $region6: #{tpu_custom_call.1} parent=1 // pred_check
      _
    $region7: #{tpu_custom_call.1} parent=1 // pred_check_branch
      %19 = sbr.rel (0) target = $region9
    $region8: #{tpu_custom_call.1} parent=1 // pred_region
      %s21 = ssub.s32 256, 256
      %22 = vsyncadd [#allocation3], %s21
      %s23 = sshll.u32 [#allocation6], 4
      %s24 = int_to_ptr.vmem [resolvable:$true] %s23
      %29 = dma.hbm_to_vmem [thread:$0]  %s1, 256, %s24, [#allocation3], 128, 128, 8
    $region9: #{tpu_custom_call.1} parent=1 // pred_fallthru
      _
    // Predicated region
    $region10: #{tpu_custom_call.1} parent=1 // pred_check
      _
    $region11: #{tpu_custom_call.1} parent=1 // pred_check_branch
      %31 = sbr.rel (0) target = $region13
    $region12: #{tpu_custom_call.1} parent=1 // pred_region
      %32 = dma.done [#allocation5], 16
    $region13: #{tpu_custom_call.1} parent=1 // pred_fallthru
      _
    // Predicated region
    $region14: #{tpu_custom_call.1} parent=1 // pred_check
      _
    $region15: #{tpu_custom_call.1} parent=1 // pred_check_branch
      %34 = sbr.rel (0) target = $region17
    $region16: #{tpu_custom_call.1} parent=1 // pred_region
      %35 = dma.done [#allocation3], 256
    $region17: #{tpu_custom_call.1} parent=1 // pred_fallthru
      _
    %36 = sfence
    %s37 = sld [smem:[#allocation2]]
    %s38 = sld [smem:[#allocation2 + $0x1]]
    %s39 = sld [smem:[#allocation2 + $0x2]]
    %v40 = vld [vmem:[#allocation6] sm:$0xff]
    %v41 = vstv %s37
    %v42 = vmul.f32 %v40, %v41
    %s43 = scalar_lea.vmem [#allocation6], 8
    %v44 = vld [vmem:[%s43] sm:$0xff]
    %v45 = vstv %s38
    %v46 = vmul.f32 %v44, %v45
    %v47 = vadd.f32 %v42, %v46
    %v48 = vstv %s39
    %v49 = vadd.f32 %v47, %v48
    %50 = vst [vmem:[#allocation7] sm:$0xff] %v49
    // Predicated region
    $region18: #{tpu_custom_call.1} parent=1 // pred_check
      _
    $region19: #{tpu_custom_call.1} parent=1 // pred_check_branch
      %52 = sbr.rel (0) target = $region21
    $region20: #{tpu_custom_call.1} parent=1 // pred_region
      %s54 = ssub.s32 128, 128
      %55 = vsyncadd [#allocation4], %s54
      %s57 = sshll.u32 [#allocation7], 4
      %s58 = int_to_ptr.vmem [resolvable:$true] %s57
      %60 = dma.vmem_to_hbm [thread:$0]  %s58, 128, %s2, [#allocation4]
    $region21: #{tpu_custom_call.1} parent=1 // pred_fallthru
      _
    // Predicated region
    $region22: #{tpu_custom_call.1} parent=1 // pred_check
      _
    $region23: #{tpu_custom_call.1} parent=1 // pred_check_branch
      %62 = sbr.rel (0) target = $region25
    $region24: #{tpu_custom_call.1} parent=1 // pred_region
      %63 = dma.done [#allocation4], 128
    $region25: #{tpu_custom_call.1} parent=1 // pred_fallthru
      _
    %64 = vsyncpa [#allocation3], 1
    %65 = vsyncpa [#allocation4], 1
    %66 = vsyncpa [#allocation5], 1

</llo_original>
